<compile_context>
chip_gen: v6e
topology: v6e:2x2x1
jax: 0.10.0
libtpu: 0.0.40
codegen_flags: <defaults>
</compile_context>

<pallas_src>
import math
import functools

import jax
import jax.numpy as jnp
from jax.experimental import pallas as pl
from jax.experimental.pallas import tpu as pltpu

_GELU_K = math.sqrt(2.0 / math.pi)


def _round_up(a: int, m: int) -> int:
    return -(-a // m) * m


def _block_kernel(x_ref, w1_ref, b1_ref, w2_ref, b2_ref, o_ref, acc_ref):
    # Grid: (row tiles, hidden tiles).  Hidden axis is the reduction (last) axis.
    k = pl.program_id(1)

    @pl.when(k == 0)
    def _init():
        acc_ref[...] = jnp.zeros_like(acc_ref)

    # c_fc slice: (TM, Dp) @ (Dp, TH) on the MXU, f32 accumulation.
    x = x_ref[...]  # native dtype -> MXU directly (bf16 stays bf16)
    h = jnp.dot(x, w1_ref[...], preferred_element_type=jnp.float32)
    h = h + b1_ref[...].astype(jnp.float32)

    # new_gelu (tanh approximation), f32 on VPU/EUP; reuse h*h to save a vmul.
    h2 = h * h
    g = 0.5 * h * (1.0 + jnp.tanh(_GELU_K * h * (1.0 + 0.044715 * h2)))

    # c_proj slice: (TM, TH) @ (TH, Dp); accumulate over hidden tiles in f32.
    acc_ref[...] += jnp.dot(g.astype(w2_ref.dtype), w2_ref[...],
                            preferred_element_type=jnp.float32)

    @pl.when(k == pl.num_programs(1) - 1)
    def _finalize():
        y = acc_ref[...] + b2_ref[...].astype(jnp.float32)
        # dropout(eval) = identity; residual add, then cast back to output dtype.
        o_ref[...] = (x_ref[...].astype(jnp.float32) + y).astype(o_ref.dtype)


@functools.partial(jax.jit, static_argnames=("tile_m_max", "tile_h_max"))
def block_forward(x, w1, b1, w2, b2, *, tile_m_max=512, tile_h_max=512):
    """x: (..., D). Returns x + c_proj(new_gelu(c_fc(x))); dropout in eval mode."""
    orig_shape = x.shape
    D = orig_shape[-1]
    H = w1.shape[1]  # 4 * D for this module
    x2 = x.reshape(-1, D)
    N = x2.shape[0]

    # Lane-dense padding: feature dims to multiples of 128, rows to the row tile.
    Dp = _round_up(D, 128)
    tile_h = min(tile_h_max, _round_up(H, 128))
    Hp = _round_up(H, tile_h)
    tile_m = min(tile_m_max, _round_up(N, 128))
    Np = _round_up(N, tile_m)

    xd = x.dtype.itemsize
    wd = w1.dtype.itemsize

    # Zero-padding keeps the math exact: padded x lanes / W rows/cols contribute 0,
    # new_gelu(0) == 0, and padded rows/cols are sliced off afterwards.
    xp = jnp.pad(x2, ((0, Np - N), (0, Dp - D)))
    w1p = jnp.pad(w1, ((0, Dp - D), (0, Hp - H)))
    b1p = jnp.pad(b1.reshape(1, H), ((0, 0), (0, Hp - H)))
    w2p = jnp.pad(w2, ((0, Hp - H), (0, Dp - D)))
    b2p = jnp.pad(b2.reshape(1, D), ((0, 0), (0, Dp - D)))

    n_row_tiles = Np // tile_m
    n_h_tiles = Hp // tile_h

    # VMEM budget: double-buffered tiles + f32 accumulator + intermediate headroom.
    vmem_est = (
        2 * tile_m * Dp * xd          # x tile (double buffered)
        + 2 * tile_m * Dp * xd        # out tile
        + 2 * Dp * tile_h * wd        # W1 slice
        + 2 * tile_h * Dp * wd        # W2 slice
        + 2 * (tile_h + Dp) * wd      # biases
        + tile_m * Dp * 4             # acc scratch
        + 2 * tile_m * tile_h * 4     # h / gelu intermediates
    )
    vmem_limit = int(min(max(2 * vmem_est, 16 * 1024 * 1024), 64 * 1024 * 1024))

    cost = pl.CostEstimate(
        flops=int(4 * Np * Dp * Hp + 10 * Np * Hp),
        transcendentals=int(Np * Hp),
        bytes_accessed=int(
            2 * Np * Dp * xd
            + n_row_tiles * (Dp * Hp + Hp * Dp + Hp + Dp) * wd
        ),
    )

    out = pl.pallas_call(
        _block_kernel,
        out_shape=jax.ShapeDtypeStruct((Np, Dp), x.dtype),
        grid_spec=pltpu.PrefetchScalarGridSpec(
            num_scalar_prefetch=0,
            grid=(n_row_tiles, n_h_tiles),
            in_specs=[
                pl.BlockSpec((tile_m, Dp), lambda i, k: (i, 0)),   # x rows (const over k)
                pl.BlockSpec((Dp, tile_h), lambda i, k: (0, k)),   # W1 slice
                pl.BlockSpec((1, tile_h), lambda i, k: (0, k)),    # b1 slice
                pl.BlockSpec((tile_h, Dp), lambda i, k: (k, 0)),   # W2 slice
                pl.BlockSpec((1, Dp), lambda i, k: (0, 0)),        # b2
            ],
            out_specs=pl.BlockSpec((tile_m, Dp), lambda i, k: (i, 0)),
            scratch_shapes=[pltpu.VMEM((tile_m, Dp), jnp.float32)],
        ),
        compiler_params=pltpu.CompilerParams(
            dimension_semantics=("parallel", "arbitrary"),
            vmem_limit_bytes=vmem_limit,
        ),
        cost_estimate=cost,
    )(xp, w1p, b1p, w2p, b2p)

    return out[:N, :D].reshape(orig_shape)


def _init_params(key, dim):
    """Deterministic init mimicking torch.nn.Linear (uniform +-1/sqrt(fan_in))."""
    hidden = 4 * dim
    k1, k2, k3, k4 = jax.random.split(key, 4)
    bound1 = 1.0 / math.sqrt(dim)
    bound2 = 1.0 / math.sqrt(hidden)
    # Stored already transposed: (in_features, out_features).
    w1 = jax.random.uniform(k1, (dim, hidden), jnp.float32, -bound1, bound1)
    b1 = jax.random.uniform(k2, (hidden,), jnp.float32, -bound1, bound1)
    w2 = jax.random.uniform(k3, (hidden, dim), jnp.float32, -bound2, bound2)
    b2 = jax.random.uniform(k4, (dim,), jnp.float32, -bound2, bound2)
    return w1, b1, w2, b2


def _reference(x, w1, b1, w2, b2):
    h = x @ w1 + b1
    g = 0.5 * h * (1.0 + jnp.tanh(_GELU_K * (h + 0.044715 * h**3)))
    return x + (g @ w2 + b2)


if __name__ == "__main__":
    B, T, D = 2, 8, 32  # batch=2, seq=8, hidden dim=32 -> MLP hidden 128
    key = jax.random.PRNGKey(0)
    kx, kp = jax.random.split(key)
    x = jax.random.normal(kx, (B, T, D), jnp.float32)
    w1, b1, w2, b2 = _init_params(kp, D)

    out = block_forward(x, w1, b1, w2, b2)
    out = jax.block_until_ready(out)

    ref = _reference(x.reshape(-1, D), w1, b1, w2, b2).reshape(B, T, D)
    assert out.shape == x.shape and out.dtype == x.dtype
    assert jnp.allclose(out, ref, atol=1e-4, rtol=1e-4), "mismatch vs reference"

    print("KERNEL_OK")
</pallas_src>

<mosaic_0001>
module attributes {stable_mosaic.version = 11 : i64} {
  func.func @_block_kernel(%arg0: i32, %arg1: i32, %arg2: memref<128x128xf32, #tpu.memory_space<vmem>>, %arg3: memref<128x128xf32, #tpu.memory_space<vmem>>, %arg4: memref<1x128xf32, #tpu.memory_space<vmem>>, %arg5: memref<128x128xf32, #tpu.memory_space<vmem>>, %arg6: memref<1x128xf32, #tpu.memory_space<vmem>>, %arg7: memref<128x128xf32, #tpu.memory_space<vmem>>, %arg8: memref<128x128xf32, #tpu.memory_space<vmem>>) attributes {dimension_semantics = [#tpu.dimension_semantics<parallel>, #tpu.dimension_semantics<arbitrary>], iteration_bounds = array<i64: 1, 1>, scalar_prefetch = 0 : i64, scratch_operands = 1 : i64, tpu.core_type = #tpu.core_type<tc>, window_params = [{transform_indices = @transform_0, window_bounds = array<i64: 128, 128>}, {transform_indices = @transform_1, window_bounds = array<i64: 128, 128>}, {transform_indices = @transform_2, window_bounds = array<i64: 1, 128>}, {transform_indices = @transform_3, window_bounds = array<i64: 128, 128>}, {pipeline_mode = #tpu.pipeline_mode<synchronous>, transform_indices = @transform_4, window_bounds = array<i64: 1, 128>}, {transform_indices = @transform_5, window_bounds = array<i64: 128, 128>}]} {
    %c0_i32 = arith.constant 0 : i32
    %0 = arith.cmpi eq, %arg1, %c0_i32 : i32
    %1 = arith.extui %0 : i1 to i32
    %c0_i32_0 = arith.constant 0 : i32
    %2 = arith.cmpi ne, %1, %c0_i32_0 : i32
    scf.if %2 {
      %cst_20 = arith.constant 0.000000e+00 : f32
      %31 = vector.broadcast %cst_20 : f32 to vector<128x128xf32>
      %c0_21 = arith.constant 0 : index
      %c0_22 = arith.constant 0 : index
      %32 = vector.load %arg8[%c0_21, %c0_22] : memref<128x128xf32, #tpu.memory_space<vmem>>, vector<128x128xf32>
      tpu.vector_store %arg8[%c0_21, %c0_22], %31 {strides = array<i32>} : memref<128x128xf32, #tpu.memory_space<vmem>>, vector<128x128xf32>,
    } else {
    }
    %c0 = arith.constant 0 : index
    %c0_1 = arith.constant 0 : index
    %3 = vector.load %arg2[%c0, %c0_1] : memref<128x128xf32, #tpu.memory_space<vmem>>, vector<128x128xf32>
    %c0_2 = arith.constant 0 : index
    %c0_3 = arith.constant 0 : index
    %4 = vector.load %arg3[%c0_2, %c0_3] : memref<128x128xf32, #tpu.memory_space<vmem>>, vector<128x128xf32>
    %cst = arith.constant dense<0.000000e+00> : vector<128x128xf32>
    %5 = tpu.matmul %3, %4, %cst {dimension_numbers = #tpu.dot_dimension_numbers<[1], [0], [0], [1], [0, 0, 1, 1], [], []>} : vector<128x128xf32>, vector<128x128xf32>, vector<128x128xf32> -> vector<128x128xf32>
    %c0_4 = arith.constant 0 : index
    %c0_5 = arith.constant 0 : index
    %6 = vector.load %arg4[%c0_4, %c0_5] : memref<1x128xf32, #tpu.memory_space<vmem>>, vector<1x128xf32>
    %7 = vector.broadcast %6 : vector<1x128xf32> to vector<128x128xf32>
    %8 = arith.addf %5, %7 : vector<128x128xf32>
    %9 = arith.mulf %8, %8 : vector<128x128xf32>
    %cst_6 = arith.constant 5.000000e-01 : f32
    %10 = vector.broadcast %cst_6 : f32 to vector<128x128xf32>
    %11 = arith.mulf %10, %8 : vector<128x128xf32>
    %cst_7 = arith.constant 0.797884583 : f32
    %12 = vector.broadcast %cst_7 : f32 to vector<128x128xf32>
    %13 = arith.mulf %12, %8 : vector<128x128xf32>
    %cst_8 = arith.constant 4.471500e-02 : f32
    %14 = vector.broadcast %cst_8 : f32 to vector<128x128xf32>
    %15 = arith.mulf %14, %9 : vector<128x128xf32>
    %cst_9 = arith.constant 1.000000e+00 : f32
    %16 = vector.broadcast %cst_9 : f32 to vector<128x128xf32>
    %17 = arith.addf %16, %15 : vector<128x128xf32>
    %18 = arith.mulf %13, %17 : vector<128x128xf32>
    %19 = math.tanh %18 : vector<128x128xf32>
    %cst_10 = arith.constant 1.000000e+00 : f32
    %20 = vector.broadcast %cst_10 : f32 to vector<128x128xf32>
    %21 = arith.addf %20, %19 : vector<128x128xf32>
    %22 = arith.mulf %11, %21 : vector<128x128xf32>
    %c0_11 = arith.constant 0 : index
    %c0_12 = arith.constant 0 : index
    %23 = vector.load %arg8[%c0_11, %c0_12] : memref<128x128xf32, #tpu.memory_space<vmem>>, vector<128x128xf32>
    %c0_13 = arith.constant 0 : index
    %c0_14 = arith.constant 0 : index
    %24 = vector.load %arg5[%c0_13, %c0_14] : memref<128x128xf32, #tpu.memory_space<vmem>>, vector<128x128xf32>
    %cst_15 = arith.constant dense<0.000000e+00> : vector<128x128xf32>
    %25 = tpu.matmul %22, %24, %cst_15 {dimension_numbers = #tpu.dot_dimension_numbers<[1], [0], [0], [1], [0, 0, 1, 1], [], []>} : vector<128x128xf32>, vector<128x128xf32>, vector<128x128xf32> -> vector<128x128xf32>
    %26 = arith.addf %23, %25 : vector<128x128xf32>
    %c0_16 = arith.constant 0 : index
    %c0_17 = arith.constant 0 : index
    %27 = vector.load %arg8[%c0_16, %c0_17] : memref<128x128xf32, #tpu.memory_space<vmem>>, vector<128x128xf32>
    tpu.vector_store %arg8[%c0_16, %c0_17], %26 {strides = array<i32>} : memref<128x128xf32, #tpu.memory_space<vmem>>, vector<128x128xf32>,
    %c0_i32_18 = arith.constant 0 : i32
    %28 = arith.cmpi eq, %arg1, %c0_i32_18 : i32
    %29 = arith.extui %28 : i1 to i32
    %c0_i32_19 = arith.constant 0 : i32
    %30 = arith.cmpi ne, %29, %c0_i32_19 : i32
    scf.if %30 {
      %c0_20 = arith.constant 0 : index
      %c0_21 = arith.constant 0 : index
      %31 = vector.load %arg8[%c0_20, %c0_21] : memref<128x128xf32, #tpu.memory_space<vmem>>, vector<128x128xf32>
      %c0_22 = arith.constant 0 : index
      %c0_23 = arith.constant 0 : index
      %32 = vector.load %arg6[%c0_22, %c0_23] : memref<1x128xf32, #tpu.memory_space<vmem>>, vector<1x128xf32>
      %33 = vector.broadcast %32 : vector<1x128xf32> to vector<128x128xf32>
      %34 = arith.addf %31, %33 : vector<128x128xf32>
      %c0_24 = arith.constant 0 : index
      %c0_25 = arith.constant 0 : index
      %35 = vector.load %arg2[%c0_24, %c0_25] : memref<128x128xf32, #tpu.memory_space<vmem>>, vector<128x128xf32>
      %36 = arith.addf %35, %34 : vector<128x128xf32>
      %c0_26 = arith.constant 0 : index
      %c0_27 = arith.constant 0 : index
      %37 = vector.load %arg7[%c0_26, %c0_27] : memref<128x128xf32, #tpu.memory_space<vmem>>, vector<128x128xf32>
      tpu.vector_store %arg7[%c0_26, %c0_27], %36 {strides = array<i32>} : memref<128x128xf32, #tpu.memory_space<vmem>>, vector<128x128xf32>,
    } else {
    }
    return
  }
  func.func @transform_0(%arg0: i32, %arg1: i32) -> (i32, i32) {
    %c0_i32 = arith.constant 0 : i32
    %c0_i32_0 = arith.constant 0 : i32
    return %arg0, %c0_i32 : i32, i32
  }
  func.func @transform_1(%arg0: i32, %arg1: i32) -> (i32, i32) {
    %c0_i32 = arith.constant 0 : i32
    %c0_i32_0 = arith.constant 0 : i32
    return %c0_i32, %arg1 : i32, i32
  }
  func.func @transform_2(%arg0: i32, %arg1: i32) -> (i32, i32) {
    %c0_i32 = arith.constant 0 : i32
    %c0_i32_0 = arith.constant 0 : i32
    return %c0_i32, %arg1 : i32, i32
  }
  func.func @transform_3(%arg0: i32, %arg1: i32) -> (i32, i32) {
    %c0_i32 = arith.constant 0 : i32
    %c0_i32_0 = arith.constant 0 : i32
    return %arg1, %c0_i32 : i32, i32
  }
  func.func @transform_4(%arg0: i32, %arg1: i32) -> (i32, i32) {
    %c0_i32 = arith.constant 0 : i32
    %c0_i32_0 = arith.constant 0 : i32
    %c0_i32_1 = arith.constant 0 : i32
    return %c0_i32, %c0_i32_0 : i32, i32
  }
  func.func @transform_5(%arg0: i32, %arg1: i32) -> (i32, i32) {
    %c0_i32 = arith.constant 0 : i32
    %c0_i32_0 = arith.constant 0 : i32
    return %arg0, %c0_i32 : i32, i32
  }
}

</mosaic_0001>

<llo_original>
// kernel: block_forward.1
$region0: #{block_forward.1}
  #allocation0 [shape = 'u32[]', space=smem, size = 0x4, offset = 0x4, fixed_abs, tag = 'smem constant byte address 0x4 - core index']
  #allocation1 [shape = 'u32[144,128]{1,0:T(1,128)}', space=vmem, size = 0x12000, scoped, tag = 'internal scratch']
  #allocation2 [shape = 'f32[128,128]{1,0:T(8,128)}', space=vmem, size = 0x10000, scoped, tag = 'scratch operand']
  %s0 = inlined_call_operand.vmem [shape: f32[128,128], index: 0, kind: input, shape index: {}]
  %s1 = inlined_call_operand.vmem [shape: f32[128,128], index: 1, kind: input, shape index: {}]
  %s2 = inlined_call_operand.vmem [shape: f32[1,128], index: 2, kind: input, shape index: {}]
  %s3 = inlined_call_operand.vmem [shape: f32[128,128], index: 3, kind: input, shape index: {}]
  %s4 = inlined_call_operand.vmem [shape: f32[1,128], index: 4, kind: input, shape index: {}]
  %s5 = inlined_call_operand.vmem [shape: f32[128,128], index: 5, kind: output, shape index: {}]
  %s6 = sld [smem:[#allocation0]]
  $region38: #{block_forward.1} parent=0
    _
  %s8 = ssub.s32 1, %s6
  %s9 = scalar_select 0, %s8, %s6
  // Predicated region
  $region2: #{block_forward.1} parent=0 // pred_check
    _
  $region3: #{block_forward.1} parent=0 // pred_check_branch
    %11 = sbr.rel (0) target = $region5
  $region4: #{block_forward.1} parent=0 // pred_region
    _
  $region5: #{block_forward.1} parent=0 // pred_fallthru
    _
  // Predicated region
  $region6: #{block_forward.1} parent=0 // pred_check
    _
  $region7: #{block_forward.1} parent=0 // pred_check_branch
    %13 = sbr.rel (0) target = $region9
  $region8: #{block_forward.1} parent=0 // pred_region
    _
  $region9: #{block_forward.1} parent=0 // pred_fallthru
    _
  // Predicated region
  $region10: #{block_forward.1} parent=0 // pred_check
    _
  $region11: #{block_forward.1} parent=0 // pred_check_branch
    %15 = sbr.rel (0) target = $region13
  $region12: #{block_forward.1} parent=0 // pred_region
    _
  $region13: #{block_forward.1} parent=0 // pred_fallthru
    _
  // Predicated region
  $region14: #{block_forward.1} parent=0 // pred_check
    _
  $region15: #{block_forward.1} parent=0 // pred_check_branch
    %17 = sbr.rel (0) target = $region17
  $region16: #{block_forward.1} parent=0 // pred_region
    _
  $region17: #{block_forward.1} parent=0 // pred_fallthru
    _
  // Predicated region
  $region18: #{block_forward.1} parent=0 // pred_check
    _
  $region19: #{block_forward.1} parent=0 // pred_check_branch
    %19 = sbr.rel (0) target = $region21
  $region20: #{block_forward.1} parent=0 // pred_region
    _
  $region21: #{block_forward.1} parent=0 // pred_fallthru
    _
  %p20 = scmp.eq.s32.totalorder 0, 0
  // Predicated region
  $region22: #{block_forward.1} parent=0 // pred_check
    %p21 = pneg %p20
  $region23: #{block_forward.1} parent=0 // pred_check_branch
    %23 = sbr.rel (%p21) target = $region25
  $region24: #{block_forward.1} parent=0 // pred_region
    %24 = vst [vmem:[#allocation2] sm:$0xff] 0.0
    %25 = vst [vmem:[#allocation2 + $0x8] sm:$0xff] 0.0
    %26 = vst [vmem:[#allocation2 + $0x10] sm:$0xff] 0.0
    %27 = vst [vmem:[#allocation2 + $0x18] sm:$0xff] 0.0
    %28 = vst [vmem:[#allocation2 + $0x20] sm:$0xff] 0.0
    %29 = vst [vmem:[#allocation2 + $0x28] sm:$0xff] 0.0
    %30 = vst [vmem:[#allocation2 + $0x30] sm:$0xff] 0.0
    %31 = vst [vmem:[#allocation2 + $0x38] sm:$0xff] 0.0
    %32 = vst [vmem:[#allocation2 + $0x40] sm:$0xff] 0.0
    %33 = vst [vmem:[#allocation2 + $0x48] sm:$0xff] 0.0
    %34 = vst [vmem:[#allocation2 + $0x50] sm:$0xff] 0.0
    %35 = vst [vmem:[#allocation2 + $0x58] sm:$0xff] 0.0
    %36 = vst [vmem:[#allocation2 + $0x60] sm:$0xff] 0.0
    %37 = vst [vmem:[#allocation2 + $0x68] sm:$0xff] 0.0
    %38 = vst [vmem:[#allocation2 + $0x70] sm:$0xff] 0.0
    %39 = vst [vmem:[#allocation2 + $0x78] sm:$0xff] 0.0
  $region25: #{block_forward.1} parent=0 // pred_fallthru
    _
  %v40 = vld [vmem:[%s0] sm:$0xff]
  %v41 = vld [vmem:[%s0 + $0x8] sm:$0xff]
  %v42 = vld [vmem:[%s0 + $0x10] sm:$0xff]
  %v43 = vld [vmem:[%s0 + $0x18] sm:$0xff]
  %v44 = vld [vmem:[%s0 + $0x20] sm:$0xff]
  %v45 = vld [vmem:[%s0 + $0x28] sm:$0xff]
  %v46 = vld [vmem:[%s0 + $0x30] sm:$0xff]
  %v47 = vld [vmem:[%s0 + $0x38] sm:$0xff]
  %v48 = vld [vmem:[%s0 + $0x40] sm:$0xff]
  %v49 = vld [vmem:[%s0 + $0x48] sm:$0xff]
  %v50 = vld [vmem:[%s0 + $0x50] sm:$0xff]
  %v51 = vld [vmem:[%s0 + $0x58] sm:$0xff]
  %v52 = vld [vmem:[%s0 + $0x60] sm:$0xff]
  %v53 = vld [vmem:[%s0 + $0x68] sm:$0xff]
  %v54 = vld [vmem:[%s0 + $0x70] sm:$0xff]
  %v55 = vld [vmem:[%s0 + $0x78] sm:$0xff]
  %v56 = vld [vmem:[%s1] sm:$0xff]
  %v57 = vld [vmem:[%s1 + $0x8] sm:$0xff]
  %v58 = vld [vmem:[%s1 + $0x10] sm:$0xff]
  %v59 = vld [vmem:[%s1 + $0x18] sm:$0xff]
  %v60 = vld [vmem:[%s1 + $0x20] sm:$0xff]
  %v61 = vld [vmem:[%s1 + $0x28] sm:$0xff]
  %v62 = vld [vmem:[%s1 + $0x30] sm:$0xff]
  %v63 = vld [vmem:[%s1 + $0x38] sm:$0xff]
  %v64 = vld [vmem:[%s1 + $0x40] sm:$0xff]
  %v65 = vld [vmem:[%s1 + $0x48] sm:$0xff]
  %v66 = vld [vmem:[%s1 + $0x50] sm:$0xff]
  %v67 = vld [vmem:[%s1 + $0x58] sm:$0xff]
  %v68 = vld [vmem:[%s1 + $0x60] sm:$0xff]
  %v69 = vld [vmem:[%s1 + $0x68] sm:$0xff]
  %v70 = vld [vmem:[%s1 + $0x70] sm:$0xff]
  %v71 = vld [vmem:[%s1 + $0x78] sm:$0xff]
  %v72 = vld [vmem:[%s2] sm:$0x1]
  %v74 = vlaneseq
  %v75 = vshrl.u32 %v74, 7
  %v76 = vsub.s32 0, %v75
  %v77 = vrot.slane %v72, %v76
  %79 = vmatprep.subr.mxu0 0.0
  %80 = vmatpush1.msra.mxu0 %v71
  %81 = vmatprep.subr.mxu0 0.0
  %82 = vmatpush1.msra.mxu0 %v70
  %83 = vmatprep.subr.mxu0 0.0
  %84 = vmatpush1.msra.mxu0 %v69
  %85 = vmatprep.subr.mxu0 0.0
  %86 = vmatpush1.msra.mxu0 %v68
  %87 = vmatprep.subr.mxu0 0.0
  %88 = vmatpush1.msra.mxu0 %v67
  %89 = vmatprep.subr.mxu0 0.0
  %90 = vmatpush1.msra.mxu0 %v66
  %91 = vmatprep.subr.mxu0 0.0
  %92 = vmatpush1.msra.mxu0 %v65
  %93 = vmatprep.subr.mxu0 0.0
  %94 = vmatpush1.msra.mxu0 %v64
  %95 = vmatprep.subr.mxu0 0.0
  %96 = vmatpush1.msra.mxu0 %v63
  %97 = vmatprep.subr.mxu0 0.0
  %98 = vmatpush1.msra.mxu0 %v62
  %99 = vmatprep.subr.mxu0 0.0
  %100 = vmatpush1.msra.mxu0 %v61
  %101 = vmatprep.subr.mxu0 0.0
  %102 = vmatpush1.msra.mxu0 %v60
  %103 = vmatprep.subr.mxu0 0.0
  %104 = vmatpush1.msra.mxu0 %v59
  %105 = vmatprep.subr.mxu0 0.0
  %106 = vmatpush1.msra.mxu0 %v58
  %107 = vmatprep.subr.mxu0 0.0
  %108 = vmatpush1.msra.mxu0 %v57
  %109 = vmatprep.subr.mxu0 0.0
  %110 = vmatpush1.msra.mxu0 %v56
  %111 = vmatprep.subr.mxu0 0.0
  %112 = vmatpush2.msra.mxu0 0.0
  %113 = vmatprep.subr.mxu0 0.0
  %114 = vmatpush2.msra.mxu0 0.0
  %115 = vmatprep.subr.mxu0 0.0
  %116 = vmatpush2.msra.mxu0 0.0
  %117 = vmatprep.subr.mxu0 0.0
  %118 = vmatpush2.msra.mxu0 0.0
  %119 = vmatprep.subr.mxu0 0.0
  %120 = vmatpush2.msra.mxu0 0.0
  %121 = vmatprep.subr.mxu0 0.0
  %122 = vmatpush2.msra.mxu0 0.0
  %123 = vmatprep.subr.mxu0 0.0
  %124 = vmatpush2.msra.mxu0 0.0
  %125 = vmatprep.subr.mxu0 0.0
  %126 = vmatpush2.msra.mxu0 0.0
  %127 = vmatprep.subr.mxu0 0.0
  %128 = vmatpush2.msra.mxu0 0.0
  %129 = vmatprep.subr.mxu0 0.0
  %130 = vmatpush2.msra.mxu0 0.0
  %131 = vmatprep.subr.mxu0 0.0
  %132 = vmatpush2.msra.mxu0 0.0
  %133 = vmatprep.subr.mxu0 0.0
  %134 = vmatpush2.msra.mxu0 0.0
  %135 = vmatprep.subr.mxu0 0.0
  %136 = vmatpush2.msra.mxu0 0.0
  %137 = vmatprep.subr.mxu0 0.0
  %138 = vmatpush2.msra.mxu0 0.0
  %139 = vmatprep.subr.mxu0 0.0
  %140 = vmatpush2.msra.mxu0 0.0
  %141 = vmatprep.subr.mxu0 0.0
  %142 = vmatpush2.msra.mxu0 0.0
  %143 = vmatprep.mubr.f32.mxu0 0.0
  %144 = vmatmul.mubr.f32.gmra.mxu0 %v40
  %v145 = vpop.f32.mrf.mxu0
  %v146 = vadd.f32 %v77, %v145
  %v147 = vpop.f32.mrf.mxu0
  %148 = vmatprep.mubr.f32.mxu0 0.0
  %149 = vmatmul.mubr.f32.gmra.mxu0 %v41
  %v150 = vpop.f32.mrf.mxu0
  %v151 = vadd.f32 %v77, %v150
  %v152 = vpop.f32.mrf.mxu0
  %153 = vmatprep.mubr.f32.mxu0 0.0
  %154 = vmatmul.mubr.f32.gmra.mxu0 %v42
  %v155 = vpop.f32.mrf.mxu0
  %v156 = vadd.f32 %v77, %v155
  %v157 = vpop.f32.mrf.mxu0
  %158 = vmatprep.mubr.f32.mxu0 0.0
  %159 = vmatmul.mubr.f32.gmra.mxu0 %v43
  %v160 = vpop.f32.mrf.mxu0
  %v161 = vadd.f32 %v77, %v160
  %v162 = vpop.f32.mrf.mxu0
  %163 = vmatprep.mubr.f32.mxu0 0.0
  %164 = vmatmul.mubr.f32.gmra.mxu0 %v44
  %v165 = vpop.f32.mrf.mxu0
  %v166 = vadd.f32 %v77, %v165
  %v167 = vpop.f32.mrf.mxu0
  %168 = vmatprep.mubr.f32.mxu0 0.0
  %169 = vmatmul.mubr.f32.gmra.mxu0 %v45
  %v170 = vpop.f32.mrf.mxu0
  %v171 = vadd.f32 %v77, %v170
  %v172 = vpop.f32.mrf.mxu0
  %173 = vmatprep.mubr.f32.mxu0 0.0
  %174 = vmatmul.mubr.f32.gmra.mxu0 %v46
  %v175 = vpop.f32.mrf.mxu0
  %v176 = vadd.f32 %v77, %v175
  %v177 = vpop.f32.mrf.mxu0
  %178 = vmatprep.mubr.f32.mxu0 0.0
  %179 = vmatmul.mubr.f32.gmra.mxu0 %v47
  %v180 = vpop.f32.mrf.mxu0
  %v181 = vadd.f32 %v77, %v180
  %v182 = vpop.f32.mrf.mxu0
  %183 = vmatprep.mubr.f32.mxu0 0.0
  %184 = vmatmul.mubr.f32.gmra.mxu0 %v48
  %v185 = vpop.f32.mrf.mxu0
  %v186 = vadd.f32 %v77, %v185
  %v187 = vpop.f32.mrf.mxu0
  %188 = vmatprep.mubr.f32.mxu0 0.0
  %189 = vmatmul.mubr.f32.gmra.mxu0 %v49
  %v190 = vpop.f32.mrf.mxu0
  %v191 = vadd.f32 %v77, %v190
  %v192 = vpop.f32.mrf.mxu0
  %193 = vmatprep.mubr.f32.mxu0 0.0
  %194 = vmatmul.mubr.f32.gmra.mxu0 %v50
  %v195 = vpop.f32.mrf.mxu0
  %v196 = vadd.f32 %v77, %v195
  %v197 = vpop.f32.mrf.mxu0
  %198 = vmatprep.mubr.f32.mxu0 0.0
  %199 = vmatmul.mubr.f32.gmra.mxu0 %v51
  %v200 = vpop.f32.mrf.mxu0
  %v201 = vadd.f32 %v77, %v200
  %v202 = vpop.f32.mrf.mxu0
  %203 = vmatprep.mubr.f32.mxu0 0.0
  %204 = vmatmul.mubr.f32.gmra.mxu0 %v52
  %v205 = vpop.f32.mrf.mxu0
  %v206 = vadd.f32 %v77, %v205
  %v207 = vpop.f32.mrf.mxu0
  %208 = vmatprep.mubr.f32.mxu0 0.0
  %209 = vmatmul.mubr.f32.gmra.mxu0 %v53
  %v210 = vpop.f32.mrf.mxu0
  %v211 = vadd.f32 %v77, %v210
  %v212 = vpop.f32.mrf.mxu0
  %213 = vmatprep.mubr.f32.mxu0 0.0
  %214 = vmatmul.mubr.f32.gmra.mxu0 %v54
  %v215 = vpop.f32.mrf.mxu0
  %v216 = vadd.f32 %v77, %v215
  %v217 = vpop.f32.mrf.mxu0
  %218 = vmatprep.mubr.f32.mxu0 0.0
  %219 = vmatmul.mubr.f32.gmra.mxu0 %v55
  %v220 = vpop.f32.mrf.mxu0
  %v221 = vadd.f32 %v77, %v220
  %v222 = vpop.f32.mrf.mxu0
  %223 = vdwg.mxu0
  %v224 = vmul.f32 %v146, %v146
  %v225 = vmul.f32 %v151, %v151
  %v226 = vmul.f32 %v156, %v156
  %v227 = vmul.f32 %v161, %v161
  %v228 = vmul.f32 %v166, %v166
  %v229 = vmul.f32 %v171, %v171
  %v230 = vmul.f32 %v176, %v176
  %v231 = vmul.f32 %v181, %v181
  %v232 = vmul.f32 %v186, %v186
  %v233 = vmul.f32 %v191, %v191
  %v234 = vmul.f32 %v196, %v196
  %v235 = vmul.f32 %v201, %v201
  %v236 = vmul.f32 %v206, %v206
  %v237 = vmul.f32 %v211, %v211
  %v238 = vmul.f32 %v216, %v216
  %v239 = vmul.f32 %v221, %v221
  %v240 = vmul.f32 %v146, 0.5
  %v241 = vmul.f32 %v151, 0.5
  %v242 = vmul.f32 %v156, 0.5
  %v243 = vmul.f32 %v161, 0.5
  %v244 = vmul.f32 %v166, 0.5
  %v245 = vmul.f32 %v171, 0.5
  %v246 = vmul.f32 %v176, 0.5
  %v247 = vmul.f32 %v181, 0.5
  %v248 = vmul.f32 %v186, 0.5
  %v249 = vmul.f32 %v191, 0.5
  %v250 = vmul.f32 %v196, 0.5
  %v251 = vmul.f32 %v201, 0.5
  %v252 = vmul.f32 %v206, 0.5
  %v253 = vmul.f32 %v211, 0.5
  %v254 = vmul.f32 %v216, 0.5
  %v255 = vmul.f32 %v221, 0.5
  %v256 = vmul.f32 %v146, 0.7978846
  %v257 = vmul.f32 %v151, 0.7978846
  %v258 = vmul.f32 %v156, 0.7978846
  %v259 = vmul.f32 %v161, 0.7978846
  %v260 = vmul.f32 %v166, 0.7978846
  %v261 = vmul.f32 %v171, 0.7978846
  %v262 = vmul.f32 %v176, 0.7978846
  %v263 = vmul.f32 %v181, 0.7978846
  %v264 = vmul.f32 %v186, 0.7978846
  %v265 = vmul.f32 %v191, 0.7978846
  %v266 = vmul.f32 %v196, 0.7978846
  %v267 = vmul.f32 %v201, 0.7978846
  %v268 = vmul.f32 %v206, 0.7978846
  %v269 = vmul.f32 %v211, 0.7978846
  %v270 = vmul.f32 %v216, 0.7978846
  %v271 = vmul.f32 %v221, 0.7978846
  %v272 = vmul.f32 %v224, 0.044715
  %v273 = vmul.f32 %v225, 0.044715
  %v274 = vmul.f32 %v226, 0.044715
  %v275 = vmul.f32 %v227, 0.044715
  %v276 = vmul.f32 %v228, 0.044715
  %v277 = vmul.f32 %v229, 0.044715
  %v278 = vmul.f32 %v230, 0.044715
  %v279 = vmul.f32 %v231, 0.044715
  %v280 = vmul.f32 %v232, 0.044715
  %v281 = vmul.f32 %v233, 0.044715
  %v282 = vmul.f32 %v234, 0.044715
  %v283 = vmul.f32 %v235, 0.044715
  %v284 = vmul.f32 %v236, 0.044715
  %v285 = vmul.f32 %v237, 0.044715
  %v286 = vmul.f32 %v238, 0.044715
  %v287 = vmul.f32 %v239, 0.044715
  %v288 = vadd.f32 %v272, 1.0
  %v289 = vadd.f32 %v273, 1.0
  %v290 = vadd.f32 %v274, 1.0
  %v291 = vadd.f32 %v275, 1.0
  %v292 = vadd.f32 %v276, 1.0
  %v293 = vadd.f32 %v277, 1.0
  %v294 = vadd.f32 %v278, 1.0
  %v295 = vadd.f32 %v279, 1.0
  %v296 = vadd.f32 %v280, 1.0
  %v297 = vadd.f32 %v281, 1.0
  %v298 = vadd.f32 %v282, 1.0
  %v299 = vadd.f32 %v283, 1.0
  %v300 = vadd.f32 %v284, 1.0
  %v301 = vadd.f32 %v285, 1.0
  %v302 = vadd.f32 %v286, 1.0
  %v303 = vadd.f32 %v287, 1.0
  %v304 = vmul.f32 %v256, %v288
  %v305 = vmul.f32 %v257, %v289
  %v306 = vmul.f32 %v258, %v290
  %v307 = vmul.f32 %v259, %v291
  %v308 = vmul.f32 %v260, %v292
  %v309 = vmul.f32 %v261, %v293
  %v310 = vmul.f32 %v262, %v294
  %v311 = vmul.f32 %v263, %v295
  %v312 = vmul.f32 %v264, %v296
  %v313 = vmul.f32 %v265, %v297
  %v314 = vmul.f32 %v266, %v298
  %v315 = vmul.f32 %v267, %v299
  %v316 = vmul.f32 %v268, %v300
  %v317 = vmul.f32 %v269, %v301
  %v318 = vmul.f32 %v270, %v302
  %v319 = vmul.f32 %v271, %v303
  %v320 = vtanh.pop %v304
  %v321 = vtanh.pop %v305
  %v322 = vtanh.pop %v306
  %v323 = vtanh.pop %v307
  %v324 = vtanh.pop %v308
  %v325 = vtanh.pop %v309
  %v326 = vtanh.pop %v310
  %v327 = vtanh.pop %v311
  %v328 = vtanh.pop %v312
  %v329 = vtanh.pop %v313
  %v330 = vtanh.pop %v314
  %v331 = vtanh.pop %v315
  %v332 = vtanh.pop %v316
  %v333 = vtanh.pop %v317
  %v334 = vtanh.pop %v318
  %v335 = vtanh.pop %v319
  %v336 = vadd.f32 %v320, 1.0
  %v337 = vadd.f32 %v321, 1.0
  %v338 = vadd.f32 %v322, 1.0
  %v339 = vadd.f32 %v323, 1.0
  %v340 = vadd.f32 %v324, 1.0
  %v341 = vadd.f32 %v325, 1.0
  %v342 = vadd.f32 %v326, 1.0
  %v343 = vadd.f32 %v327, 1.0
  %v344 = vadd.f32 %v328, 1.0
  %v345 = vadd.f32 %v329, 1.0
  %v346 = vadd.f32 %v330, 1.0
  %v347 = vadd.f32 %v331, 1.0
  %v348 = vadd.f32 %v332, 1.0
  %v349 = vadd.f32 %v333, 1.0
  %v350 = vadd.f32 %v334, 1.0
  %v351 = vadd.f32 %v335, 1.0
  %v352 = vmul.f32 %v240, %v336
  %v353 = vmul.f32 %v241, %v337
  %v354 = vmul.f32 %v242, %v338
  %v355 = vmul.f32 %v243, %v339
  %v356 = vmul.f32 %v244, %v340
  %v357 = vmul.f32 %v245, %v341
  %v358 = vmul.f32 %v246, %v342
  %v359 = vmul.f32 %v247, %v343
  %v360 = vmul.f32 %v248, %v344
  %v361 = vmul.f32 %v249, %v345
  %v362 = vmul.f32 %v250, %v346
  %v363 = vmul.f32 %v251, %v347
  %v364 = vmul.f32 %v252, %v348
  %v365 = vmul.f32 %v253, %v349
  %v366 = vmul.f32 %v254, %v350
  %v367 = vmul.f32 %v255, %v351
  %v368 = vld [vmem:[#allocation2] sm:$0xff]
  %v369 = vld [vmem:[#allocation2 + $0x8] sm:$0xff]
  %v370 = vld [vmem:[#allocation2 + $0x10] sm:$0xff]
  %v371 = vld [vmem:[#allocation2 + $0x18] sm:$0xff]
  %v372 = vld [vmem:[#allocation2 + $0x20] sm:$0xff]
  %v373 = vld [vmem:[#allocation2 + $0x28] sm:$0xff]
  %v374 = vld [vmem:[#allocation2 + $0x30] sm:$0xff]
  %v375 = vld [vmem:[#allocation2 + $0x38] sm:$0xff]
  %v376 = vld [vmem:[#allocation2 + $0x40] sm:$0xff]
  %v377 = vld [vmem:[#allocation2 + $0x48] sm:$0xff]
  %v378 = vld [vmem:[#allocation2 + $0x50] sm:$0xff]
  %v379 = vld [vmem:[#allocation2 + $0x58] sm:$0xff]
  %v380 = vld [vmem:[#allocation2 + $0x60] sm:$0xff]
  %v381 = vld [vmem:[#allocation2 + $0x68] sm:$0xff]
  %v382 = vld [vmem:[#allocation2 + $0x70] sm:$0xff]
  %v383 = vld [vmem:[#allocation2 + $0x78] sm:$0xff]
  %v384 = vld [vmem:[%s3] sm:$0xff]
  %v385 = vld [vmem:[%s3 + $0x8] sm:$0xff]
  %v386 = vld [vmem:[%s3 + $0x10] sm:$0xff]
  %v387 = vld [vmem:[%s3 + $0x18] sm:$0xff]
  %v388 = vld [vmem:[%s3 + $0x20] sm:$0xff]
  %v389 = vld [vmem:[%s3 + $0x28] sm:$0xff]
  %v390 = vld [vmem:[%s3 + $0x30] sm:$0xff]
  %v391 = vld [vmem:[%s3 + $0x38] sm:$0xff]
  %v392 = vld [vmem:[%s3 + $0x40] sm:$0xff]
  %v393 = vld [vmem:[%s3 + $0x48] sm:$0xff]
  %v394 = vld [vmem:[%s3 + $0x50] sm:$0xff]
  %v395 = vld [vmem:[%s3 + $0x58] sm:$0xff]
  %v396 = vld [vmem:[%s3 + $0x60] sm:$0xff]
  %v397 = vld [vmem:[%s3 + $0x68] sm:$0xff]
  %v398 = vld [vmem:[%s3 + $0x70] sm:$0xff]
  %v399 = vld [vmem:[%s3 + $0x78] sm:$0xff]
  %400 = vmatprep.subr.mxu0 0.0
  %401 = vmatpush1.msra.mxu0 %v399
  %402 = vmatprep.subr.mxu0 0.0
  %403 = vmatpush1.msra.mxu0 %v398
  %404 = vmatprep.subr.mxu0 0.0
  %405 = vmatpush1.msra.mxu0 %v397
  %406 = vmatprep.subr.mxu0 0.0
  %407 = vmatpush1.msra.mxu0 %v396
  %408 = vmatprep.subr.mxu0 0.0
  %409 = vmatpush1.msra.mxu0 %v395
  %410 = vmatprep.subr.mxu0 0.0
  %411 = vmatpush1.msra.mxu0 %v394
  %412 = vmatprep.subr.mxu0 0.0
  %413 = vmatpush1.msra.mxu0 %v393
  %414 = vmatprep.subr.mxu0 0.0
  %415 = vmatpush1.msra.mxu0 %v392
  %416 = vmatprep.subr.mxu0 0.0
  %417 = vmatpush1.msra.mxu0 %v391
  %418 = vmatprep.subr.mxu0 0.0
  %419 = vmatpush1.msra.mxu0 %v390
  %420 = vmatprep.subr.mxu0 0.0
  %421 = vmatpush1.msra.mxu0 %v389
  %422 = vmatprep.subr.mxu0 0.0
  %423 = vmatpush1.msra.mxu0 %v388
  %424 = vmatprep.subr.mxu0 0.0
  %425 = vmatpush1.msra.mxu0 %v387
  %426 = vmatprep.subr.mxu0 0.0
  %427 = vmatpush1.msra.mxu0 %v386
  %428 = vmatprep.subr.mxu0 0.0
  %429 = vmatpush1.msra.mxu0 %v385
  %430 = vmatprep.subr.mxu0 0.0
  %431 = vmatpush1.msra.mxu0 %v384
  %432 = vmatprep.subr.mxu0 0.0
  %433 = vmatpush2.msra.mxu0 0.0
  %434 = vmatprep.subr.mxu0 0.0
  %435 = vmatpush2.msra.mxu0 0.0
  %436 = vmatprep.subr.mxu0 0.0
  %437 = vmatpush2.msra.mxu0 0.0
  %438 = vmatprep.subr.mxu0 0.0
  %439 = vmatpush2.msra.mxu0 0.0
  %440 = vmatprep.subr.mxu0 0.0
  %441 = vmatpush2.msra.mxu0 0.0
  %442 = vmatprep.subr.mxu0 0.0
  %443 = vmatpush2.msra.mxu0 0.0
  %444 = vmatprep.subr.mxu0 0.0
  %445 = vmatpush2.msra.mxu0 0.0
  %446 = vmatprep.subr.mxu0 0.0
  %447 = vmatpush2.msra.mxu0 0.0
  %448 = vmatprep.subr.mxu0 0.0
  %449 = vmatpush2.msra.mxu0 0.0
  %450 = vmatprep.subr.mxu0 0.0
  %451 = vmatpush2.msra.mxu0 0.0
  %452 = vmatprep.subr.mxu0 0.0
  %453 = vmatpush2.msra.mxu0 0.0
  %454 = vmatprep.subr.mxu0 0.0
  %455 = vmatpush2.msra.mxu0 0.0
  %456 = vmatprep.subr.mxu0 0.0
  %457 = vmatpush2.msra.mxu0 0.0
  %458 = vmatprep.subr.mxu0 0.0
  %459 = vmatpush2.msra.mxu0 0.0
  %460 = vmatprep.subr.mxu0 0.0
  %461 = vmatpush2.msra.mxu0 0.0
  %462 = vmatprep.subr.mxu0 0.0
  %463 = vmatpush2.msra.mxu0 0.0
  %464 = vmatprep.mubr.f32.mxu0 0.0
  %465 = vmatmul.mubr.f32.gmra.mxu0 %v352
  %v466 = vpop.f32.mrf.mxu0
  %v467 = vadd.f32 0.0, %v466
  %v468 = vpop.f32.mrf.mxu0
  %469 = vmatprep.mubr.f32.mxu0 0.0
  %470 = vmatmul.mubr.f32.gmra.mxu0 %v353
  %v471 = vpop.f32.mrf.mxu0
  %v472 = vadd.f32 0.0, %v471
  %v473 = vpop.f32.mrf.mxu0
  %474 = vmatprep.mubr.f32.mxu0 0.0
  %475 = vmatmul.mubr.f32.gmra.mxu0 %v354
  %v476 = vpop.f32.mrf.mxu0
  %v477 = vadd.f32 0.0, %v476
  %v478 = vpop.f32.mrf.mxu0
  %479 = vmatprep.mubr.f32.mxu0 0.0
  %480 = vmatmul.mubr.f32.gmra.mxu0 %v355
  %v481 = vpop.f32.mrf.mxu0
  %v482 = vadd.f32 0.0, %v481
  %v483 = vpop.f32.mrf.mxu0
  %484 = vmatprep.mubr.f32.mxu0 0.0
  %485 = vmatmul.mubr.f32.gmra.mxu0 %v356
  %v486 = vpop.f32.mrf.mxu0
  %v487 = vadd.f32 0.0, %v486
  %v488 = vpop.f32.mrf.mxu0
  %489 = vmatprep.mubr.f32.mxu0 0.0
  %490 = vmatmul.mubr.f32.gmra.mxu0 %v357
  %v491 = vpop.f32.mrf.mxu0
  %v492 = vadd.f32 0.0, %v491
  %v493 = vpop.f32.mrf.mxu0
  %494 = vmatprep.mubr.f32.mxu0 0.0
  %495 = vmatmul.mubr.f32.gmra.mxu0 %v358
  %v496 = vpop.f32.mrf.mxu0
  %v497 = vadd.f32 0.0, %v496
  %v498 = vpop.f32.mrf.mxu0
  %499 = vmatprep.mubr.f32.mxu0 0.0
  %500 = vmatmul.mubr.f32.gmra.mxu0 %v359
  %v501 = vpop.f32.mrf.mxu0
  %v502 = vadd.f32 0.0, %v501
  %v503 = vpop.f32.mrf.mxu0
  %504 = vmatprep.mubr.f32.mxu0 0.0
  %505 = vmatmul.mubr.f32.gmra.mxu0 %v360
  %v506 = vpop.f32.mrf.mxu0
  %v507 = vadd.f32 0.0, %v506
  %v508 = vpop.f32.mrf.mxu0
  %509 = vmatprep.mubr.f32.mxu0 0.0
  %510 = vmatmul.mubr.f32.gmra.mxu0 %v361
  %v511 = vpop.f32.mrf.mxu0
  %v512 = vadd.f32 0.0, %v511
  %v513 = vpop.f32.mrf.mxu0
  %514 = vmatprep.mubr.f32.mxu0 0.0
  %515 = vmatmul.mubr.f32.gmra.mxu0 %v362
  %v516 = vpop.f32.mrf.mxu0
  %v517 = vadd.f32 0.0, %v516
  %v518 = vpop.f32.mrf.mxu0
  %519 = vmatprep.mubr.f32.mxu0 0.0
  %520 = vmatmul.mubr.f32.gmra.mxu0 %v363
  %v521 = vpop.f32.mrf.mxu0
  %v522 = vadd.f32 0.0, %v521
  %v523 = vpop.f32.mrf.mxu0
  %524 = vmatprep.mubr.f32.mxu0 0.0
  %525 = vmatmul.mubr.f32.gmra.mxu0 %v364
  %v526 = vpop.f32.mrf.mxu0
  %v527 = vadd.f32 0.0, %v526
  %v528 = vpop.f32.mrf.mxu0
  %529 = vmatprep.mubr.f32.mxu0 0.0
  %530 = vmatmul.mubr.f32.gmra.mxu0 %v365
  %v531 = vpop.f32.mrf.mxu0
  %v532 = vadd.f32 0.0, %v531
  %v533 = vpop.f32.mrf.mxu0
  %534 = vmatprep.mubr.f32.mxu0 0.0
  %535 = vmatmul.mubr.f32.gmra.mxu0 %v366
  %v536 = vpop.f32.mrf.mxu0
  %v537 = vadd.f32 0.0, %v536
  %v538 = vpop.f32.mrf.mxu0
  %539 = vmatprep.mubr.f32.mxu0 0.0
  %540 = vmatmul.mubr.f32.gmra.mxu0 %v367
  %v541 = vpop.f32.mrf.mxu0
  %v542 = vadd.f32 0.0, %v541
  %v543 = vpop.f32.mrf.mxu0
  %544 = vdwg.mxu0
  %v545 = vadd.f32 %v368, %v467
  %v546 = vadd.f32 %v369, %v472
  %v547 = vadd.f32 %v370, %v477
  %v548 = vadd.f32 %v371, %v482
  %v549 = vadd.f32 %v372, %v487
  %v550 = vadd.f32 %v373, %v492
  %v551 = vadd.f32 %v374, %v497
  %v552 = vadd.f32 %v375, %v502
  %v553 = vadd.f32 %v376, %v507
  %v554 = vadd.f32 %v377, %v512
  %v555 = vadd.f32 %v378, %v517
  %v556 = vadd.f32 %v379, %v522
  %v557 = vadd.f32 %v380, %v527
  %v558 = vadd.f32 %v381, %v532
  %v559 = vadd.f32 %v382, %v537
  %v560 = vadd.f32 %v383, %v542
  %561 = vst [vmem:[#allocation2] sm:$0xff] %v545
  %562 = vst [vmem:[#allocation2 + $0x8] sm:$0xff] %v546
  %563 = vst [vmem:[#allocation2 + $0x10] sm:$0xff] %v547
  %564 = vst [vmem:[#allocation2 + $0x18] sm:$0xff] %v548
  %565 = vst [vmem:[#allocation2 + $0x20] sm:$0xff] %v549
  %566 = vst [vmem:[#allocation2 + $0x28] sm:$0xff] %v550
  %567 = vst [vmem:[#allocation2 + $0x30] sm:$0xff] %v551
  %568 = vst [vmem:[#allocation2 + $0x38] sm:$0xff] %v552
  %569 = vst [vmem:[#allocation2 + $0x40] sm:$0xff] %v553
  %570 = vst [vmem:[#allocation2 + $0x48] sm:$0xff] %v554
  %571 = vst [vmem:[#allocation2 + $0x50] sm:$0xff] %v555
  %572 = vst [vmem:[#allocation2 + $0x58] sm:$0xff] %v556
  %573 = vst [vmem:[#allocation2 + $0x60] sm:$0xff] %v557
  %574 = vst [vmem:[#allocation2 + $0x68] sm:$0xff] %v558
  %575 = vst [vmem:[#allocation2 + $0x70] sm:$0xff] %v559
  %576 = vst [vmem:[#allocation2 + $0x78] sm:$0xff] %v560
  // Predicated region
  $region26: #{block_forward.1} parent=0 // pred_check
    %p577 = pneg %p20
  $region27: #{block_forward.1} parent=0 // pred_check_branch
    %579 = sbr.rel (%p577) target = $region29
  $region28: #{block_forward.1} parent=0 // pred_region
    %v580 = vld [vmem:[#allocation2] sm:$0xff]
    %v581 = vld [vmem:[#allocation2 + $0x8] sm:$0xff]
    %v582 = vld [vmem:[#allocation2 + $0x10] sm:$0xff]
    %v583 = vld [vmem:[#allocation2 + $0x18] sm:$0xff]
    %v584 = vld [vmem:[#allocation2 + $0x20] sm:$0xff]
    %v585 = vld [vmem:[#allocation2 + $0x28] sm:$0xff]
    %v586 = vld [vmem:[#allocation2 + $0x30] sm:$0xff]
    %v587 = vld [vmem:[#allocation2 + $0x38] sm:$0xff]
    %v588 = vld [vmem:[#allocation2 + $0x40] sm:$0xff]
    %v589 = vld [vmem:[#allocation2 + $0x48] sm:$0xff]
    %v590 = vld [vmem:[#allocation2 + $0x50] sm:$0xff]
    %v591 = vld [vmem:[#allocation2 + $0x58] sm:$0xff]
    %v592 = vld [vmem:[#allocation2 + $0x60] sm:$0xff]
    %v593 = vld [vmem:[#allocation2 + $0x68] sm:$0xff]
    %v594 = vld [vmem:[#allocation2 + $0x70] sm:$0xff]
    %v595 = vld [vmem:[#allocation2 + $0x78] sm:$0xff]
    %v596 = vld [vmem:[%s4] sm:$0x1]
    %v598 = vlaneseq
    %v599 = vshrl.u32 %v598, 7
    %v600 = vsub.s32 0, %v599
    %v601 = vrot.slane %v596, %v600
    %v603 = vadd.f32 %v580, %v601
    %v604 = vadd.f32 %v581, %v601
    %v605 = vadd.f32 %v582, %v601
    %v606 = vadd.f32 %v583, %v601
    %v607 = vadd.f32 %v584, %v601
    %v608 = vadd.f32 %v585, %v601
    %v609 = vadd.f32 %v586, %v601
    %v610 = vadd.f32 %v587, %v601
    %v611 = vadd.f32 %v588, %v601
    %v612 = vadd.f32 %v589, %v601
    %v613 = vadd.f32 %v590, %v601
    %v614 = vadd.f32 %v591, %v601
    %v615 = vadd.f32 %v592, %v601
    %v616 = vadd.f32 %v593, %v601
    %v617 = vadd.f32 %v594, %v601
    %v618 = vadd.f32 %v595, %v601
    %v619 = vld [vmem:[%s0] sm:$0xff]
    %v620 = vld [vmem:[%s0 + $0x8] sm:$0xff]
    %v621 = vld [vmem:[%s0 + $0x10] sm:$0xff]
    %v622 = vld [vmem:[%s0 + $0x18] sm:$0xff]
    %v623 = vld [vmem:[%s0 + $0x20] sm:$0xff]
    %v624 = vld [vmem:[%s0 + $0x28] sm:$0xff]
    %v625 = vld [vmem:[%s0 + $0x30] sm:$0xff]
    %v626 = vld [vmem:[%s0 + $0x38] sm:$0xff]
    %v627 = vld [vmem:[%s0 + $0x40] sm:$0xff]
    %v628 = vld [vmem:[%s0 + $0x48] sm:$0xff]
    %v629 = vld [vmem:[%s0 + $0x50] sm:$0xff]
    %v630 = vld [vmem:[%s0 + $0x58] sm:$0xff]
    %v631 = vld [vmem:[%s0 + $0x60] sm:$0xff]
    %v632 = vld [vmem:[%s0 + $0x68] sm:$0xff]
    %v633 = vld [vmem:[%s0 + $0x70] sm:$0xff]
    %v634 = vld [vmem:[%s0 + $0x78] sm:$0xff]
    %v635 = vadd.f32 %v619, %v603
    %v636 = vadd.f32 %v620, %v604
    %v637 = vadd.f32 %v621, %v605
    %v638 = vadd.f32 %v622, %v606
    %v639 = vadd.f32 %v623, %v607
    %v640 = vadd.f32 %v624, %v608
    %v641 = vadd.f32 %v625, %v609
    %v642 = vadd.f32 %v626, %v610
    %v643 = vadd.f32 %v627, %v611
    %v644 = vadd.f32 %v628, %v612
    %v645 = vadd.f32 %v629, %v613
    %v646 = vadd.f32 %v630, %v614
    %v647 = vadd.f32 %v631, %v615
    %v648 = vadd.f32 %v632, %v616
    %v649 = vadd.f32 %v633, %v617
    %v650 = vadd.f32 %v634, %v618
    %651 = vst [vmem:[%s5] sm:$0xff] %v635
    %652 = vst [vmem:[%s5 + $0x8] sm:$0xff] %v636
    %653 = vst [vmem:[%s5 + $0x10] sm:$0xff] %v637
    %654 = vst [vmem:[%s5 + $0x18] sm:$0xff] %v638
    %655 = vst [vmem:[%s5 + $0x20] sm:$0xff] %v639
    %656 = vst [vmem:[%s5 + $0x28] sm:$0xff] %v640
    %657 = vst [vmem:[%s5 + $0x30] sm:$0xff] %v641
    %658 = vst [vmem:[%s5 + $0x38] sm:$0xff] %v642
    %659 = vst [vmem:[%s5 + $0x40] sm:$0xff] %v643
    %660 = vst [vmem:[%s5 + $0x48] sm:$0xff] %v644
    %661 = vst [vmem:[%s5 + $0x50] sm:$0xff] %v645
    %662 = vst [vmem:[%s5 + $0x58] sm:$0xff] %v646
    %663 = vst [vmem:[%s5 + $0x60] sm:$0xff] %v647
    %664 = vst [vmem:[%s5 + $0x68] sm:$0xff] %v648
    %665 = vst [vmem:[%s5 + $0x70] sm:$0xff] %v649
    %666 = vst [vmem:[%s5 + $0x78] sm:$0xff] %v650
  $region29: #{block_forward.1} parent=0 // pred_fallthru
    _
  // Predicated region
  $region30: #{block_forward.1} parent=0 // pred_check
    _
  $region31: #{block_forward.1} parent=0 // pred_check_branch
    %668 = sbr.rel (0) target = $region33
  $region32: #{block_forward.1} parent=0 // pred_region
    _
  $region33: #{block_forward.1} parent=0 // pred_fallthru
    _
  // Predicated region
  $region34: #{block_forward.1} parent=0 // pred_check
    _
  $region35: #{block_forward.1} parent=0 // pred_check_branch
    %670 = sbr.rel (0) target = $region37
  $region36: #{block_forward.1} parent=0 // pred_region
    _
  $region37: #{block_forward.1} parent=0 // pred_fallthru
    _

</llo_original>
